<compile_context>
chip_gen: v5e
topology: v5e:2x2
jax: 0.10.0
libtpu: 0.0.40
codegen_flags: <defaults>
</compile_context>

<pallas_src>
import functools

import jax
import jax.numpy as jnp
from jax.experimental import pallas as pl
from jax.experimental.pallas import tpu as pltpu

IN_DIM = 2
HID1 = 64        # real hidden-1 width
HID = 128        # padded hidden width (all hidden activations are 128 rows)
LANE = 128
T_SUB = 16       # output rows padded to a multiple of 16 (bf16 sublane tile)


def _round_up(x, m):
    return ((x + m - 1) // m) * m


def _default_tile_m(B):
    """Batch tile: one big tile for small batches (per-grid-step overhead
    dominates), otherwise split into >= 2 steps (keeps both v7x TensorCores
    busy via dimension_semantics=('parallel',)), capped at 2048 rows — the
    VMEM footprint even at 2048 is only a few MiB."""
    b_pad = _round_up(max(B, 1), LANE)
    if b_pad <= 256:
        return b_pad
    return min(2048, _round_up((b_pad + 1) // 2, LANE))


def _mlp_kernel(x_ref,
                w1_ref, b1_ref,
                w2_ref, b2_ref,
                w3_ref, b3_ref,
                w4_ref, b4_ref,
                w5_ref, b5_ref,
                o_ref):
    """Fused forward pass for one batch tile, all activations [feat, batch]."""
    xT = x_ref[...].astype(jnp.float32)                     # (2, tile_m)

    # Layer 1: K=2 contraction on the VPU — two outer-product FMAs of the
    # weight columns with the two sublane rows of x^T.  Output rows 64..127
    # are zero (padded weights/bias) and stay zero through the ReLU.
    w1 = w1_ref[...]                                         # (128, 2) f32
    h = (w1[:, 0:1] * xT[0:1, :]
         + w1[:, 1:2] * xT[1:2, :]
         + b1_ref[...])                                      # (128, tile_m) f32
    h = jnp.maximum(h, 0.0)

    # Layers 2-4: bf16 MXU matmuls (W_pt @ h^T), f32 accumulation, f32
    # bias + ReLU, back to back with no extra elementwise work.
    for w_ref, b_ref in ((w2_ref, b2_ref), (w3_ref, b3_ref), (w4_ref, b4_ref)):
        h = jnp.dot(w_ref[...], h.astype(jnp.bfloat16),
                    preferred_element_type=jnp.float32) + b_ref[...]
        h = jnp.maximum(h, 0.0)

    # Layer 5: (T_pad, 128) @ (128, tile_m) -> (T_pad, tile_m).  T_pad is only
    # a sublane pad (16), so the f32 store is tiny and lane-dense.
    out = jnp.dot(w5_ref[...], h.astype(jnp.bfloat16),
                  preferred_element_type=jnp.float32) + b5_ref[...]
    o_ref[...] = out.astype(o_ref.dtype)


@functools.partial(jax.jit, static_argnames=("tile_m",))
def _forward_padded(x_t, flat_params, tile_m):
    """x_t: [2, B_pad] f32 with B_pad % tile_m == 0. Returns [T_pad, B_pad]."""
    in_dim, B_pad = x_t.shape
    t_pad = flat_params[-1].shape[0]            # sublane-padded output rows

    # Weights/biases are grid-invariant (index_map always (0, 0)), so they are
    # DMA'd once and stay resident in VMEM across all batch tiles (<~0.5 MiB).
    # (pipeline_mode=pl.Buffered(1) would halve their footprint; left at the
    # default for portability — VMEM is nowhere near the limit.)
    def const_spec(arr):
        return pl.BlockSpec(arr.shape, lambda i: (0, 0))

    in_specs = [pl.BlockSpec((in_dim, tile_m), lambda i: (0, i))]
    in_specs += [const_spec(a) for a in flat_params]
    out_spec = pl.BlockSpec((t_pad, tile_m), lambda i: (0, i))

    return pl.pallas_call(
        _mlp_kernel,
        out_shape=jax.ShapeDtypeStruct((t_pad, B_pad), jnp.float32),
        grid_spec=pltpu.PrefetchScalarGridSpec(
            num_scalar_prefetch=0,
            grid=(B_pad // tile_m,),
            in_specs=in_specs,
            out_specs=out_spec,
        ),
        compiler_params=pltpu.CompilerParams(
            dimension_semantics=("parallel",)),
    )(x_t, *flat_params)


def pr_predictor_forward(x, flat_params, T, tile_m=None):
    """x: [B, 2] float32. flat_params: output of prepare_params. Returns [B, T]."""
    B = x.shape[0]
    if tile_m is None:
        tile_m = _default_tile_m(B)
    B_pad = _round_up(B, tile_m)
    x_t = jnp.transpose(x).astype(jnp.float32)          # (2, B): contiguous DMA
    if B_pad != B:                                       # skip pad when aligned
        x_t = jnp.pad(x_t, ((0, 0), (0, B_pad - B)))
    out_t = _forward_padded(x_t, tuple(flat_params), tile_m=tile_m)
    return out_t[:T, :B].T                               # tiny (T, B) transpose


def init_params(key, T):
    """PyTorch-nn.Linear-style init: U[-1/sqrt(fan_in), +1/sqrt(fan_in)].

    Returns [(W [out, in] f32, b [out] f32)] for the 5 layers (unpadded,
    PyTorch layout)."""
    dims = [(IN_DIM, HID1), (HID1, HID), (HID, HID), (HID, HID), (HID, T)]
    params = []
    for fan_in, fan_out in dims:
        key, kw, kb = jax.random.split(key, 3)
        bound = float(fan_in) ** -0.5
        w = jax.random.uniform(kw, (fan_out, fan_in), jnp.float32, -bound, bound)
        b = jax.random.uniform(kb, (fan_out,), jnp.float32, -bound, bound)
        params.append((w, b))
    return params


def prepare_params(params, T):
    """Pad / cast PyTorch-layout params into the kernel's layout.

    - hidden-1 zero-padded 64 -> 128 (W1/b1 rows, W2 columns): padded rows
      stay exactly 0 through the ReLU and contribute nothing to layer 2.
    - output zero-padded T -> round_up(T, 16) rows (sublane pad only); the
      wrapper slices the real T rows back out.
    - MXU weights (layers 2-5) cast to bf16; layer-1 weights and all biases
      stay f32 (VPU path / f32 bias add)."""
    (w1, b1), (w2, b2), (w3, b3), (w4, b4), (w5, b5) = params
    t_pad = _round_up(max(T, 1), T_SUB)

    w1p = jnp.zeros((HID, IN_DIM), jnp.float32).at[:HID1, :].set(w1)
    b1p = jnp.zeros((HID, 1), jnp.float32).at[:HID1, 0].set(b1)
    w2p = jnp.zeros((HID, HID), jnp.float32).at[:, :HID1].set(w2)
    b2p = b2.reshape(HID, 1)
    b3p = b3.reshape(HID, 1)
    b4p = b4.reshape(HID, 1)
    w5p = jnp.zeros((t_pad, HID), jnp.float32).at[:T, :].set(w5)
    b5p = jnp.zeros((t_pad, 1), jnp.float32).at[:T, 0].set(b5)

    bf = jnp.bfloat16
    return (w1p, b1p,
            w2p.astype(bf), b2p,
            w3.astype(bf), b3p,
            w4.astype(bf), b4p,
            w5p.astype(bf), b5p)


def reference_forward_f32(x, params):
    """Pure-f32 PyTorch-semantics reference (W is [out, in])."""
    h = x
    for i, (w, b) in enumerate(params):
        h = h @ w.T + b
        if i < len(params) - 1:
            h = jnp.maximum(h, 0.0)
    return h


def reference_forward_kernel_math(x, flat, T):
    """Pure-JAX re-implementation of the exact kernel math (same layout/casts)."""
    w1, b1, w2, b2, w3, b3, w4, b4, w5, b5 = flat
    xt = jnp.transpose(x).astype(jnp.float32)
    h = w1[:, 0:1] * xt[0:1, :] + w1[:, 1:2] * xt[1:2, :] + b1
    h = jnp.maximum(h, 0.0)
    for w, b in ((w2, b2), (w3, b3), (w4, b4)):
        h = jnp.dot(w, h.astype(jnp.bfloat16),
                    preferred_element_type=jnp.float32) + b
        h = jnp.maximum(h, 0.0)
    out = jnp.dot(w5, h.astype(jnp.bfloat16),
                  preferred_element_type=jnp.float32) + b5
    return out[:T, :].T


if __name__ == "__main__":
    T = 8                      # horizon length of the predictor head

    params = init_params(jax.random.PRNGKey(0), T)
    flat = prepare_params(params, T)

    # Two small batches: one already tile-aligned (256) and one that exercises
    # the padding + slicing path (200).
    for B in (256, 200):
        kx = jax.random.fold_in(jax.random.PRNGKey(0), B)
        x = jax.random.normal(kx, (B, IN_DIM), jnp.float32)

        out = jax.block_until_ready(pr_predictor_forward(x, flat, T))
        assert out.shape == (B, T), out.shape

        # Tight check against a pure-JAX implementation of the exact kernel
        # math (same padding / transposed layout / bf16 casts).
        ref_k = reference_forward_kernel_math(x, flat, T)
        assert jnp.allclose(out, ref_k, atol=2e-3, rtol=2e-3), \
            float(jnp.max(jnp.abs(out - ref_k)))

        # Looser check against the full-f32 PyTorch-semantics reference (bf16
        # MXU operands loosen the tolerance).
        ref_f = reference_forward_f32(x, params)
        assert jnp.allclose(out, ref_f, atol=5e-2, rtol=5e-2), \
            float(jnp.max(jnp.abs(out - ref_f)))

    print("KERNEL_OK")
</pallas_src>

<mosaic_0001>
module attributes {stable_mosaic.version = 11 : i64} {
  func.func @_mlp_kernel(%arg0: i32, %arg1: memref<2x256xf32, #tpu.memory_space<vmem>>, %arg2: memref<128x2xf32, #tpu.memory_space<vmem>>, %arg3: memref<128x1xf32, #tpu.memory_space<vmem>>, %arg4: memref<128x128xbf16, #tpu.memory_space<vmem>>, %arg5: memref<128x1xf32, #tpu.memory_space<vmem>>, %arg6: memref<128x128xbf16, #tpu.memory_space<vmem>>, %arg7: memref<128x1xf32, #tpu.memory_space<vmem>>, %arg8: memref<128x128xbf16, #tpu.memory_space<vmem>>, %arg9: memref<128x1xf32, #tpu.memory_space<vmem>>, %arg10: memref<16x128xbf16, #tpu.memory_space<vmem>>, %arg11: memref<16x1xf32, #tpu.memory_space<vmem>>, %arg12: memref<16x256xf32, #tpu.memory_space<vmem>>) attributes {dimension_semantics = [#tpu.dimension_semantics<parallel>], iteration_bounds = array<i64: 1>, scalar_prefetch = 0 : i64, scratch_operands = 0 : i64, tpu.core_type = #tpu.core_type<tc>, window_params = [{transform_indices = @transform_0, window_bounds = array<i64: 2, 256>}, {pipeline_mode = #tpu.pipeline_mode<synchronous>, transform_indices = @transform_1, window_bounds = array<i64: 128, 2>}, {pipeline_mode = #tpu.pipeline_mode<synchronous>, transform_indices = @transform_2, window_bounds = array<i64: 128, 1>}, {pipeline_mode = #tpu.pipeline_mode<synchronous>, transform_indices = @transform_3, window_bounds = array<i64: 128, 128>}, {pipeline_mode = #tpu.pipeline_mode<synchronous>, transform_indices = @transform_4, window_bounds = array<i64: 128, 1>}, {pipeline_mode = #tpu.pipeline_mode<synchronous>, transform_indices = @transform_5, window_bounds = array<i64: 128, 128>}, {pipeline_mode = #tpu.pipeline_mode<synchronous>, transform_indices = @transform_6, window_bounds = array<i64: 128, 1>}, {pipeline_mode = #tpu.pipeline_mode<synchronous>, transform_indices = @transform_7, window_bounds = array<i64: 128, 128>}, {pipeline_mode = #tpu.pipeline_mode<synchronous>, transform_indices = @transform_8, window_bounds = array<i64: 128, 1>}, {pipeline_mode = #tpu.pipeline_mode<synchronous>, transform_indices = @transform_9, window_bounds = array<i64: 16, 128>}, {pipeline_mode = #tpu.pipeline_mode<synchronous>, transform_indices = @transform_10, window_bounds = array<i64: 16, 1>}, {transform_indices = @transform_11, window_bounds = array<i64: 16, 256>}]} {
    %c0 = arith.constant 0 : index
    %c0_0 = arith.constant 0 : index
    %0 = vector.load %arg1[%c0, %c0_0] : memref<2x256xf32, #tpu.memory_space<vmem>>, vector<2x256xf32>
    %c0_1 = arith.constant 0 : index
    %c0_2 = arith.constant 0 : index
    %1 = vector.load %arg2[%c0_1, %c0_2] : memref<128x2xf32, #tpu.memory_space<vmem>>, vector<128x2xf32>
    %2 = vector.extract_strided_slice %1 {offsets = [0, 0], sizes = [128, 1], strides = [1, 1]} : vector<128x2xf32> to vector<128x1xf32>
    %3 = vector.extract_strided_slice %0 {offsets = [0, 0], sizes = [1, 256], strides = [1, 1]} : vector<2x256xf32> to vector<1x256xf32>
    %4 = vector.broadcast %2 : vector<128x1xf32> to vector<128x256xf32>
    %5 = vector.broadcast %3 : vector<1x256xf32> to vector<128x256xf32>
    %6 = arith.mulf %4, %5 : vector<128x256xf32>
    %7 = vector.extract_strided_slice %1 {offsets = [0, 1], sizes = [128, 1], strides = [1, 1]} : vector<128x2xf32> to vector<128x1xf32>
    %8 = vector.extract_strided_slice %0 {offsets = [1, 0], sizes = [1, 256], strides = [1, 1]} : vector<2x256xf32> to vector<1x256xf32>
    %9 = vector.broadcast %7 : vector<128x1xf32> to vector<128x256xf32>
    %10 = vector.broadcast %8 : vector<1x256xf32> to vector<128x256xf32>
    %11 = arith.mulf %9, %10 : vector<128x256xf32>
    %12 = arith.addf %6, %11 : vector<128x256xf32>
    %c0_3 = arith.constant 0 : index
    %c0_4 = arith.constant 0 : index
    %13 = vector.load %arg3[%c0_3, %c0_4] : memref<128x1xf32, #tpu.memory_space<vmem>>, vector<128x1xf32>
    %14 = vector.broadcast %13 : vector<128x1xf32> to vector<128x256xf32>
    %15 = arith.addf %12, %14 : vector<128x256xf32>
    %cst = arith.constant 0.000000e+00 : f32
    %16 = vector.broadcast %cst : f32 to vector<128x256xf32>
    %17 = arith.maximumf %15, %16 : vector<128x256xf32>
    %c0_5 = arith.constant 0 : index
    %c0_6 = arith.constant 0 : index
    %18 = vector.load %arg4[%c0_5, %c0_6] : memref<128x128xbf16, #tpu.memory_space<vmem>>, vector<128x128xbf16>
    %19 = arith.truncf %17 : vector<128x256xf32> to vector<128x256xbf16>
    %cst_7 = arith.constant dense<0.000000e+00> : vector<128x256xf32>
    %20 = tpu.matmul %18, %19, %cst_7 {dimension_numbers = #tpu.dot_dimension_numbers<[1], [0], [0], [1], [0, 0, 1, 1], [], []>} : vector<128x128xbf16>, vector<128x256xbf16>, vector<128x256xf32> -> vector<128x256xf32>
    %c0_8 = arith.constant 0 : index
    %c0_9 = arith.constant 0 : index
    %21 = vector.load %arg5[%c0_8, %c0_9] : memref<128x1xf32, #tpu.memory_space<vmem>>, vector<128x1xf32>
    %22 = vector.broadcast %21 : vector<128x1xf32> to vector<128x256xf32>
    %23 = arith.addf %20, %22 : vector<128x256xf32>
    %cst_10 = arith.constant 0.000000e+00 : f32
    %24 = vector.broadcast %cst_10 : f32 to vector<128x256xf32>
    %25 = arith.maximumf %23, %24 : vector<128x256xf32>
    %c0_11 = arith.constant 0 : index
    %c0_12 = arith.constant 0 : index
    %26 = vector.load %arg6[%c0_11, %c0_12] : memref<128x128xbf16, #tpu.memory_space<vmem>>, vector<128x128xbf16>
    %27 = arith.truncf %25 : vector<128x256xf32> to vector<128x256xbf16>
    %cst_13 = arith.constant dense<0.000000e+00> : vector<128x256xf32>
    %28 = tpu.matmul %26, %27, %cst_13 {dimension_numbers = #tpu.dot_dimension_numbers<[1], [0], [0], [1], [0, 0, 1, 1], [], []>} : vector<128x128xbf16>, vector<128x256xbf16>, vector<128x256xf32> -> vector<128x256xf32>
    %c0_14 = arith.constant 0 : index
    %c0_15 = arith.constant 0 : index
    %29 = vector.load %arg7[%c0_14, %c0_15] : memref<128x1xf32, #tpu.memory_space<vmem>>, vector<128x1xf32>
    %30 = vector.broadcast %29 : vector<128x1xf32> to vector<128x256xf32>
    %31 = arith.addf %28, %30 : vector<128x256xf32>
    %cst_16 = arith.constant 0.000000e+00 : f32
    %32 = vector.broadcast %cst_16 : f32 to vector<128x256xf32>
    %33 = arith.maximumf %31, %32 : vector<128x256xf32>
    %c0_17 = arith.constant 0 : index
    %c0_18 = arith.constant 0 : index
    %34 = vector.load %arg8[%c0_17, %c0_18] : memref<128x128xbf16, #tpu.memory_space<vmem>>, vector<128x128xbf16>
    %35 = arith.truncf %33 : vector<128x256xf32> to vector<128x256xbf16>
    %cst_19 = arith.constant dense<0.000000e+00> : vector<128x256xf32>
    %36 = tpu.matmul %34, %35, %cst_19 {dimension_numbers = #tpu.dot_dimension_numbers<[1], [0], [0], [1], [0, 0, 1, 1], [], []>} : vector<128x128xbf16>, vector<128x256xbf16>, vector<128x256xf32> -> vector<128x256xf32>
    %c0_20 = arith.constant 0 : index
    %c0_21 = arith.constant 0 : index
    %37 = vector.load %arg9[%c0_20, %c0_21] : memref<128x1xf32, #tpu.memory_space<vmem>>, vector<128x1xf32>
    %38 = vector.broadcast %37 : vector<128x1xf32> to vector<128x256xf32>
    %39 = arith.addf %36, %38 : vector<128x256xf32>
    %cst_22 = arith.constant 0.000000e+00 : f32
    %40 = vector.broadcast %cst_22 : f32 to vector<128x256xf32>
    %41 = arith.maximumf %39, %40 : vector<128x256xf32>
    %c0_23 = arith.constant 0 : index
    %c0_24 = arith.constant 0 : index
    %42 = vector.load %arg10[%c0_23, %c0_24] : memref<16x128xbf16, #tpu.memory_space<vmem>>, vector<16x128xbf16>
    %43 = arith.truncf %41 : vector<128x256xf32> to vector<128x256xbf16>
    %cst_25 = arith.constant dense<0.000000e+00> : vector<16x256xf32>
    %44 = tpu.matmul %42, %43, %cst_25 {dimension_numbers = #tpu.dot_dimension_numbers<[1], [0], [0], [1], [0, 0, 1, 1], [], []>} : vector<16x128xbf16>, vector<128x256xbf16>, vector<16x256xf32> -> vector<16x256xf32>
    %c0_26 = arith.constant 0 : index
    %c0_27 = arith.constant 0 : index
    %45 = vector.load %arg11[%c0_26, %c0_27] : memref<16x1xf32, #tpu.memory_space<vmem>>, vector<16x1xf32>
    %46 = vector.broadcast %45 : vector<16x1xf32> to vector<16x256xf32>
    %47 = arith.addf %44, %46 : vector<16x256xf32>
    %c0_28 = arith.constant 0 : index
    %c0_29 = arith.constant 0 : index
    %48 = vector.load %arg12[%c0_28, %c0_29] : memref<16x256xf32, #tpu.memory_space<vmem>>, vector<16x256xf32>
    tpu.vector_store %arg12[%c0_28, %c0_29], %47 {strides = array<i32>} : memref<16x256xf32, #tpu.memory_space<vmem>>, vector<16x256xf32>,
    return
  }
  func.func @transform_0(%arg0: i32) -> (i32, i32) {
    %c0_i32 = arith.constant 0 : i32
    %c0_i32_0 = arith.constant 0 : i32
    return %c0_i32, %arg0 : i32, i32
  }
  func.func @transform_1(%arg0: i32) -> (i32, i32) {
    %c0_i32 = arith.constant 0 : i32
    %c0_i32_0 = arith.constant 0 : i32
    %c0_i32_1 = arith.constant 0 : i32
    return %c0_i32, %c0_i32_0 : i32, i32
  }
  func.func @transform_2(%arg0: i32) -> (i32, i32) {
    %c0_i32 = arith.constant 0 : i32
    %c0_i32_0 = arith.constant 0 : i32
    %c0_i32_1 = arith.constant 0 : i32
    return %c0_i32, %c0_i32_0 : i32, i32
  }
  func.func @transform_3(%arg0: i32) -> (i32, i32) {
    %c0_i32 = arith.constant 0 : i32
    %c0_i32_0 = arith.constant 0 : i32
    %c0_i32_1 = arith.constant 0 : i32
    return %c0_i32, %c0_i32_0 : i32, i32
  }
  func.func @transform_4(%arg0: i32) -> (i32, i32) {
    %c0_i32 = arith.constant 0 : i32
    %c0_i32_0 = arith.constant 0 : i32
    %c0_i32_1 = arith.constant 0 : i32
    return %c0_i32, %c0_i32_0 : i32, i32
  }
  func.func @transform_5(%arg0: i32) -> (i32, i32) {
    %c0_i32 = arith.constant 0 : i32
    %c0_i32_0 = arith.constant 0 : i32
    %c0_i32_1 = arith.constant 0 : i32
    return %c0_i32, %c0_i32_0 : i32, i32
  }
  func.func @transform_6(%arg0: i32) -> (i32, i32) {
    %c0_i32 = arith.constant 0 : i32
    %c0_i32_0 = arith.constant 0 : i32
    %c0_i32_1 = arith.constant 0 : i32
    return %c0_i32, %c0_i32_0 : i32, i32
  }
  func.func @transform_7(%arg0: i32) -> (i32, i32) {
    %c0_i32 = arith.constant 0 : i32
    %c0_i32_0 = arith.constant 0 : i32
    %c0_i32_1 = arith.constant 0 : i32
    return %c0_i32, %c0_i32_0 : i32, i32
  }
  func.func @transform_8(%arg0: i32) -> (i32, i32) {
    %c0_i32 = arith.constant 0 : i32
    %c0_i32_0 = arith.constant 0 : i32
    %c0_i32_1 = arith.constant 0 : i32
    return %c0_i32, %c0_i32_0 : i32, i32
  }
  func.func @transform_9(%arg0: i32) -> (i32, i32) {
    %c0_i32 = arith.constant 0 : i32
    %c0_i32_0 = arith.constant 0 : i32
    %c0_i32_1 = arith.constant 0 : i32
    return %c0_i32, %c0_i32_0 : i32, i32
  }
  func.func @transform_10(%arg0: i32) -> (i32, i32) {
    %c0_i32 = arith.constant 0 : i32
    %c0_i32_0 = arith.constant 0 : i32
    %c0_i32_1 = arith.constant 0 : i32
    return %c0_i32, %c0_i32_0 : i32, i32
  }
  func.func @transform_11(%arg0: i32) -> (i32, i32) {
    %c0_i32 = arith.constant 0 : i32
    %c0_i32_0 = arith.constant 0 : i32
    return %c0_i32, %arg0 : i32, i32
  }
}

</mosaic_0001>

<llo_original>
// kernel: _forward_padded.1
$region0: #{_forward_padded.1}
  #allocation0 [shape = 'u32[]', space=smem, size = 0x4, offset = 0x4, fixed_abs, tag = 'smem constant byte address 0x4 - core index']
  #allocation1 [shape = 'u32[72,128]{1,0:T(1,128)}', space=vmem, size = 0x9000, scoped, tag = 'internal scratch']
  %s0 = inlined_call_operand.vmem [shape: f32[2,256], index: 0, kind: input, shape index: {}]
  %s1 = inlined_call_operand.vmem [shape: f32[128,2], index: 1, kind: input, shape index: {}]
  %s2 = inlined_call_operand.vmem [shape: f32[128,1], index: 2, kind: input, shape index: {}]
  %s3 = inlined_call_operand.vmem [shape: bf16[128,128], index: 3, kind: input, shape index: {}]
  %s4 = inlined_call_operand.vmem [shape: f32[128,1], index: 4, kind: input, shape index: {}]
  %s5 = inlined_call_operand.vmem [shape: bf16[128,128], index: 5, kind: input, shape index: {}]
  %s6 = inlined_call_operand.vmem [shape: f32[128,1], index: 6, kind: input, shape index: {}]
  %s7 = inlined_call_operand.vmem [shape: bf16[128,128], index: 7, kind: input, shape index: {}]
  %s8 = inlined_call_operand.vmem [shape: f32[128,1], index: 8, kind: input, shape index: {}]
  %s9 = inlined_call_operand.vmem [shape: bf16[16,128], index: 9, kind: input, shape index: {}]
  %s10 = inlined_call_operand.vmem [shape: f32[16,1], index: 10, kind: input, shape index: {}]
  %s11 = inlined_call_operand.hbm [shape: f32[16,256], index: 11, kind: output, shape index: {}]
  %s12 = sld [smem:[#allocation0]]
  $region54: #{_forward_padded.1} parent=0
    _
  %s14 = ssub.s32 1, %s12
  %s15 = scalar_select 0, %s14, %s12
  $region1: #{_forward_padded.1} parent=0
    #allocation2 [shape = 'u8[16384]{0}', space=vmem, size = 0x4000, scoped, tag = 'output window, operand 0, single buffered']
    #allocation3 [shape = 's32[1]{0}', space=sflag, size = 0x4, scoped, tag = 'scoped memory for _forward_padded.1']
    %16 = vsyncpa [#allocation3], 0
    // Predicated region
    $region2: #{_forward_padded.1} parent=1 // pred_check
      _
    $region3: #{_forward_padded.1} parent=1 // pred_check_branch
      %18 = sbr.rel (0) target = $region5
    $region4: #{_forward_padded.1} parent=1 // pred_region
      _
    $region5: #{_forward_padded.1} parent=1 // pred_fallthru
      _
    // Predicated region
    $region6: #{_forward_padded.1} parent=1 // pred_check
      _
    $region7: #{_forward_padded.1} parent=1 // pred_check_branch
      %20 = sbr.rel (0) target = $region9
    $region8: #{_forward_padded.1} parent=1 // pred_region
      _
    $region9: #{_forward_padded.1} parent=1 // pred_fallthru
      _
    // Predicated region
    $region10: #{_forward_padded.1} parent=1 // pred_check
      _
    $region11: #{_forward_padded.1} parent=1 // pred_check_branch
      %22 = sbr.rel (0) target = $region13
    $region12: #{_forward_padded.1} parent=1 // pred_region
      _
    $region13: #{_forward_padded.1} parent=1 // pred_fallthru
      _
    // Predicated region
    $region14: #{_forward_padded.1} parent=1 // pred_check
      _
    $region15: #{_forward_padded.1} parent=1 // pred_check_branch
      %24 = sbr.rel (0) target = $region17
    $region16: #{_forward_padded.1} parent=1 // pred_region
      _
    $region17: #{_forward_padded.1} parent=1 // pred_fallthru
      _
    // Predicated region
    $region18: #{_forward_padded.1} parent=1 // pred_check
      _
    $region19: #{_forward_padded.1} parent=1 // pred_check_branch
      %26 = sbr.rel (0) target = $region21
    $region20: #{_forward_padded.1} parent=1 // pred_region
      _
    $region21: #{_forward_padded.1} parent=1 // pred_fallthru
      _
    // Predicated region
    $region22: #{_forward_padded.1} parent=1 // pred_check
      _
    $region23: #{_forward_padded.1} parent=1 // pred_check_branch
      %28 = sbr.rel (0) target = $region25
    $region24: #{_forward_padded.1} parent=1 // pred_region
      _
    $region25: #{_forward_padded.1} parent=1 // pred_fallthru
      _
    // Predicated region
    $region26: #{_forward_padded.1} parent=1 // pred_check
      _
    $region27: #{_forward_padded.1} parent=1 // pred_check_branch
      %30 = sbr.rel (0) target = $region29
    $region28: #{_forward_padded.1} parent=1 // pred_region
      _
    $region29: #{_forward_padded.1} parent=1 // pred_fallthru
      _
    // Predicated region
    $region30: #{_forward_padded.1} parent=1 // pred_check
      _
    $region31: #{_forward_padded.1} parent=1 // pred_check_branch
      %32 = sbr.rel (0) target = $region33
    $region32: #{_forward_padded.1} parent=1 // pred_region
      _
    $region33: #{_forward_padded.1} parent=1 // pred_fallthru
      _
    // Predicated region
    $region34: #{_forward_padded.1} parent=1 // pred_check
      _
    $region35: #{_forward_padded.1} parent=1 // pred_check_branch
      %34 = sbr.rel (0) target = $region37
    $region36: #{_forward_padded.1} parent=1 // pred_region
      _
    $region37: #{_forward_padded.1} parent=1 // pred_fallthru
      _
    // Predicated region
    $region38: #{_forward_padded.1} parent=1 // pred_check
      _
    $region39: #{_forward_padded.1} parent=1 // pred_check_branch
      %36 = sbr.rel (0) target = $region41
    $region40: #{_forward_padded.1} parent=1 // pred_region
      _
    $region41: #{_forward_padded.1} parent=1 // pred_fallthru
      _
    // Predicated region
    $region42: #{_forward_padded.1} parent=1 // pred_check
      _
    $region43: #{_forward_padded.1} parent=1 // pred_check_branch
      %38 = sbr.rel (0) target = $region45
    $region44: #{_forward_padded.1} parent=1 // pred_region
      _
    $region45: #{_forward_padded.1} parent=1 // pred_fallthru
      _
    %v39 = vld [vmem:[%s0] sm:$0xf]
    %v40 = vld [vmem:[%s1] sm:$0xff]
    %v41 = vld [vmem:[%s1 + $0x8] sm:$0xff]
    %v42 = vld [vmem:[%s1 + $0x10] sm:$0xff]
    %v43 = vld [vmem:[%s1 + $0x18] sm:$0xff]
    %v44 = vld [vmem:[%s1 + $0x20] sm:$0xff]
    %v45 = vld [vmem:[%s1 + $0x28] sm:$0xff]
    %v46 = vld [vmem:[%s1 + $0x30] sm:$0xff]
    %v47 = vld [vmem:[%s1 + $0x38] sm:$0xff]
    %v48 = vld [vmem:[%s1 + $0x40] sm:$0xff]
    %v49 = vld [vmem:[%s1 + $0x48] sm:$0xff]
    %v50 = vld [vmem:[%s1 + $0x50] sm:$0xff]
    %v51 = vld [vmem:[%s1 + $0x58] sm:$0xff]
    %v52 = vld [vmem:[%s1 + $0x60] sm:$0xff]
    %v53 = vld [vmem:[%s1 + $0x68] sm:$0xff]
    %v54 = vld [vmem:[%s1 + $0x70] sm:$0xff]
    %v55 = vld [vmem:[%s1 + $0x78] sm:$0xff]
    %57 = vset.pattern.permute.xlu0 0
    %58 = vperm.xlu0 %57, %v40
    %v59 = vpop.permute.xlu0 %58
    %62 = vset.pattern.permute.xlu0 0
    %63 = vperm.xlu0 %62, %v41
    %v64 = vpop.permute.xlu0 %63
    %67 = vset.pattern.permute.xlu0 0
    %68 = vperm.xlu0 %67, %v42
    %v69 = vpop.permute.xlu0 %68
    %72 = vset.pattern.permute.xlu0 0
    %73 = vperm.xlu0 %72, %v43
    %v74 = vpop.permute.xlu0 %73
    %77 = vset.pattern.permute.xlu0 0
    %78 = vperm.xlu0 %77, %v44
    %v79 = vpop.permute.xlu0 %78
    %82 = vset.pattern.permute.xlu0 0
    %83 = vperm.xlu0 %82, %v45
    %v84 = vpop.permute.xlu0 %83
    %87 = vset.pattern.permute.xlu0 0
    %88 = vperm.xlu0 %87, %v46
    %v89 = vpop.permute.xlu0 %88
    %92 = vset.pattern.permute.xlu0 0
    %93 = vperm.xlu0 %92, %v47
    %v94 = vpop.permute.xlu0 %93
    %97 = vset.pattern.permute.xlu0 0
    %98 = vperm.xlu0 %97, %v48
    %v99 = vpop.permute.xlu0 %98
    %102 = vset.pattern.permute.xlu0 0
    %103 = vperm.xlu0 %102, %v49
    %v104 = vpop.permute.xlu0 %103
    %107 = vset.pattern.permute.xlu0 0
    %108 = vperm.xlu0 %107, %v50
    %v109 = vpop.permute.xlu0 %108
    %112 = vset.pattern.permute.xlu0 0
    %113 = vperm.xlu0 %112, %v51
    %v114 = vpop.permute.xlu0 %113
    %117 = vset.pattern.permute.xlu0 0
    %118 = vperm.xlu0 %117, %v52
    %v119 = vpop.permute.xlu0 %118
    %122 = vset.pattern.permute.xlu0 0
    %123 = vperm.xlu0 %122, %v53
    %v124 = vpop.permute.xlu0 %123
    %127 = vset.pattern.permute.xlu0 0
    %128 = vperm.xlu0 %127, %v54
    %v129 = vpop.permute.xlu0 %128
    %132 = vset.pattern.permute.xlu0 0
    %133 = vperm.xlu0 %132, %v55
    %v134 = vpop.permute.xlu0 %133
    %v137 = vperm.slane %v39, 0
    %v138 = vperm.slane %v39, 2
    %v141 = vperm.slane %v137, 0
    %v142 = vperm.slane %v138, 0
    %v143 = vmul.f32 %v59, %v141
    %v144 = vmul.f32 %v59, %v142
    %v145 = vmul.f32 %v64, %v141
    %v146 = vmul.f32 %v64, %v142
    %v147 = vmul.f32 %v69, %v141
    %v148 = vmul.f32 %v69, %v142
    %v149 = vmul.f32 %v74, %v141
    %v150 = vmul.f32 %v74, %v142
    %v151 = vmul.f32 %v79, %v141
    %v152 = vmul.f32 %v79, %v142
    %v153 = vmul.f32 %v84, %v141
    %v154 = vmul.f32 %v84, %v142
    %v155 = vmul.f32 %v89, %v141
    %v156 = vmul.f32 %v89, %v142
    %v157 = vmul.f32 %v94, %v141
    %v158 = vmul.f32 %v94, %v142
    %v159 = vmul.f32 %v99, %v141
    %v160 = vmul.f32 %v99, %v142
    %v161 = vmul.f32 %v104, %v141
    %v162 = vmul.f32 %v104, %v142
    %v163 = vmul.f32 %v109, %v141
    %v164 = vmul.f32 %v109, %v142
    %v165 = vmul.f32 %v114, %v141
    %v166 = vmul.f32 %v114, %v142
    %v167 = vmul.f32 %v119, %v141
    %v168 = vmul.f32 %v119, %v142
    %v169 = vmul.f32 %v124, %v141
    %v170 = vmul.f32 %v124, %v142
    %v171 = vmul.f32 %v129, %v141
    %v172 = vmul.f32 %v129, %v142
    %v173 = vmul.f32 %v134, %v141
    %v174 = vmul.f32 %v134, %v142
    %175 = vset.pattern.permute.xlu0 1
    %176 = vperm.xlu0 %175, %v40
    %v177 = vpop.permute.xlu0 %176
    %179 = vset.pattern.permute.xlu0 1
    %180 = vperm.xlu0 %179, %v41
    %v181 = vpop.permute.xlu0 %180
    %183 = vset.pattern.permute.xlu0 1
    %184 = vperm.xlu0 %183, %v42
    %v185 = vpop.permute.xlu0 %184
    %187 = vset.pattern.permute.xlu0 1
    %188 = vperm.xlu0 %187, %v43
    %v189 = vpop.permute.xlu0 %188
    %191 = vset.pattern.permute.xlu0 1
    %192 = vperm.xlu0 %191, %v44
    %v193 = vpop.permute.xlu0 %192
    %195 = vset.pattern.permute.xlu0 1
    %196 = vperm.xlu0 %195, %v45
    %v197 = vpop.permute.xlu0 %196
    %199 = vset.pattern.permute.xlu0 1
    %200 = vperm.xlu0 %199, %v46
    %v201 = vpop.permute.xlu0 %200
    %203 = vset.pattern.permute.xlu0 1
    %204 = vperm.xlu0 %203, %v47
    %v205 = vpop.permute.xlu0 %204
    %207 = vset.pattern.permute.xlu0 1
    %208 = vperm.xlu0 %207, %v48
    %v209 = vpop.permute.xlu0 %208
    %211 = vset.pattern.permute.xlu0 1
    %212 = vperm.xlu0 %211, %v49
    %v213 = vpop.permute.xlu0 %212
    %215 = vset.pattern.permute.xlu0 1
    %216 = vperm.xlu0 %215, %v50
    %v217 = vpop.permute.xlu0 %216
    %219 = vset.pattern.permute.xlu0 1
    %220 = vperm.xlu0 %219, %v51
    %v221 = vpop.permute.xlu0 %220
    %223 = vset.pattern.permute.xlu0 1
    %224 = vperm.xlu0 %223, %v52
    %v225 = vpop.permute.xlu0 %224
    %227 = vset.pattern.permute.xlu0 1
    %228 = vperm.xlu0 %227, %v53
    %v229 = vpop.permute.xlu0 %228
    %231 = vset.pattern.permute.xlu0 1
    %232 = vperm.xlu0 %231, %v54
    %v233 = vpop.permute.xlu0 %232
    %235 = vset.pattern.permute.xlu0 1
    %236 = vperm.xlu0 %235, %v55
    %v237 = vpop.permute.xlu0 %236
    %v239 = vperm.slane %v39, 1
    %v240 = vperm.slane %v39, 3
    %v243 = vperm.slane %v239, 1
    %v244 = vperm.slane %v240, 1
    %v245 = vmul.f32 %v177, %v243
    %v246 = vmul.f32 %v177, %v244
    %v247 = vmul.f32 %v181, %v243
    %v248 = vmul.f32 %v181, %v244
    %v249 = vmul.f32 %v185, %v243
    %v250 = vmul.f32 %v185, %v244
    %v251 = vmul.f32 %v189, %v243
    %v252 = vmul.f32 %v189, %v244
    %v253 = vmul.f32 %v193, %v243
    %v254 = vmul.f32 %v193, %v244
    %v255 = vmul.f32 %v197, %v243
    %v256 = vmul.f32 %v197, %v244
    %v257 = vmul.f32 %v201, %v243
    %v258 = vmul.f32 %v201, %v244
    %v259 = vmul.f32 %v205, %v243
    %v260 = vmul.f32 %v205, %v244
    %v261 = vmul.f32 %v209, %v243
    %v262 = vmul.f32 %v209, %v244
    %v263 = vmul.f32 %v213, %v243
    %v264 = vmul.f32 %v213, %v244
    %v265 = vmul.f32 %v217, %v243
    %v266 = vmul.f32 %v217, %v244
    %v267 = vmul.f32 %v221, %v243
    %v268 = vmul.f32 %v221, %v244
    %v269 = vmul.f32 %v225, %v243
    %v270 = vmul.f32 %v225, %v244
    %v271 = vmul.f32 %v229, %v243
    %v272 = vmul.f32 %v229, %v244
    %v273 = vmul.f32 %v233, %v243
    %v274 = vmul.f32 %v233, %v244
    %v275 = vmul.f32 %v237, %v243
    %v276 = vmul.f32 %v237, %v244
    %v277 = vadd.f32 %v143, %v245
    %v278 = vadd.f32 %v144, %v246
    %v279 = vadd.f32 %v145, %v247
    %v280 = vadd.f32 %v146, %v248
    %v281 = vadd.f32 %v147, %v249
    %v282 = vadd.f32 %v148, %v250
    %v283 = vadd.f32 %v149, %v251
    %v284 = vadd.f32 %v150, %v252
    %v285 = vadd.f32 %v151, %v253
    %v286 = vadd.f32 %v152, %v254
    %v287 = vadd.f32 %v153, %v255
    %v288 = vadd.f32 %v154, %v256
    %v289 = vadd.f32 %v155, %v257
    %v290 = vadd.f32 %v156, %v258
    %v291 = vadd.f32 %v157, %v259
    %v292 = vadd.f32 %v158, %v260
    %v293 = vadd.f32 %v159, %v261
    %v294 = vadd.f32 %v160, %v262
    %v295 = vadd.f32 %v161, %v263
    %v296 = vadd.f32 %v162, %v264
    %v297 = vadd.f32 %v163, %v265
    %v298 = vadd.f32 %v164, %v266
    %v299 = vadd.f32 %v165, %v267
    %v300 = vadd.f32 %v166, %v268
    %v301 = vadd.f32 %v167, %v269
    %v302 = vadd.f32 %v168, %v270
    %v303 = vadd.f32 %v169, %v271
    %v304 = vadd.f32 %v170, %v272
    %v305 = vadd.f32 %v171, %v273
    %v306 = vadd.f32 %v172, %v274
    %v307 = vadd.f32 %v173, %v275
    %v308 = vadd.f32 %v174, %v276
    %v309 = vld [vmem:[%s2] sm:$0xff]
    %v310 = vld [vmem:[%s2 + $0x8] sm:$0xff]
    %v311 = vld [vmem:[%s2 + $0x10] sm:$0xff]
    %v312 = vld [vmem:[%s2 + $0x18] sm:$0xff]
    %v313 = vld [vmem:[%s2 + $0x20] sm:$0xff]
    %v314 = vld [vmem:[%s2 + $0x28] sm:$0xff]
    %v315 = vld [vmem:[%s2 + $0x30] sm:$0xff]
    %v316 = vld [vmem:[%s2 + $0x38] sm:$0xff]
    %v317 = vld [vmem:[%s2 + $0x40] sm:$0xff]
    %v318 = vld [vmem:[%s2 + $0x48] sm:$0xff]
    %v319 = vld [vmem:[%s2 + $0x50] sm:$0xff]
    %v320 = vld [vmem:[%s2 + $0x58] sm:$0xff]
    %v321 = vld [vmem:[%s2 + $0x60] sm:$0xff]
    %v322 = vld [vmem:[%s2 + $0x68] sm:$0xff]
    %v323 = vld [vmem:[%s2 + $0x70] sm:$0xff]
    %v324 = vld [vmem:[%s2 + $0x78] sm:$0xff]
    %326 = vset.pattern.permute.xlu0 0
    %327 = vperm.xlu0 %326, %v309
    %v328 = vpop.permute.xlu0 %327
    %331 = vset.pattern.permute.xlu0 0
    %332 = vperm.xlu0 %331, %v310
    %v333 = vpop.permute.xlu0 %332
    %336 = vset.pattern.permute.xlu0 0
    %337 = vperm.xlu0 %336, %v311
    %v338 = vpop.permute.xlu0 %337
    %341 = vset.pattern.permute.xlu0 0
    %342 = vperm.xlu0 %341, %v312
    %v343 = vpop.permute.xlu0 %342
    %346 = vset.pattern.permute.xlu0 0
    %347 = vperm.xlu0 %346, %v313
    %v348 = vpop.permute.xlu0 %347
    %351 = vset.pattern.permute.xlu0 0
    %352 = vperm.xlu0 %351, %v314
    %v353 = vpop.permute.xlu0 %352
    %356 = vset.pattern.permute.xlu0 0
    %357 = vperm.xlu0 %356, %v315
    %v358 = vpop.permute.xlu0 %357
    %361 = vset.pattern.permute.xlu0 0
    %362 = vperm.xlu0 %361, %v316
    %v363 = vpop.permute.xlu0 %362
    %366 = vset.pattern.permute.xlu0 0
    %367 = vperm.xlu0 %366, %v317
    %v368 = vpop.permute.xlu0 %367
    %371 = vset.pattern.permute.xlu0 0
    %372 = vperm.xlu0 %371, %v318
    %v373 = vpop.permute.xlu0 %372
    %376 = vset.pattern.permute.xlu0 0
    %377 = vperm.xlu0 %376, %v319
    %v378 = vpop.permute.xlu0 %377
    %381 = vset.pattern.permute.xlu0 0
    %382 = vperm.xlu0 %381, %v320
    %v383 = vpop.permute.xlu0 %382
    %386 = vset.pattern.permute.xlu0 0
    %387 = vperm.xlu0 %386, %v321
    %v388 = vpop.permute.xlu0 %387
    %391 = vset.pattern.permute.xlu0 0
    %392 = vperm.xlu0 %391, %v322
    %v393 = vpop.permute.xlu0 %392
    %396 = vset.pattern.permute.xlu0 0
    %397 = vperm.xlu0 %396, %v323
    %v398 = vpop.permute.xlu0 %397
    %401 = vset.pattern.permute.xlu0 0
    %402 = vperm.xlu0 %401, %v324
    %v403 = vpop.permute.xlu0 %402
    %v405 = vadd.f32 %v277, %v328
    %v406 = vadd.f32 %v278, %v328
    %v407 = vadd.f32 %v279, %v333
    %v408 = vadd.f32 %v280, %v333
    %v409 = vadd.f32 %v281, %v338
    %v410 = vadd.f32 %v282, %v338
    %v411 = vadd.f32 %v283, %v343
    %v412 = vadd.f32 %v284, %v343
    %v413 = vadd.f32 %v285, %v348
    %v414 = vadd.f32 %v286, %v348
    %v415 = vadd.f32 %v287, %v353
    %v416 = vadd.f32 %v288, %v353
    %v417 = vadd.f32 %v289, %v358
    %v418 = vadd.f32 %v290, %v358
    %v419 = vadd.f32 %v291, %v363
    %v420 = vadd.f32 %v292, %v363
    %v421 = vadd.f32 %v293, %v368
    %v422 = vadd.f32 %v294, %v368
    %v423 = vadd.f32 %v295, %v373
    %v424 = vadd.f32 %v296, %v373
    %v425 = vadd.f32 %v297, %v378
    %v426 = vadd.f32 %v298, %v378
    %v427 = vadd.f32 %v299, %v383
    %v428 = vadd.f32 %v300, %v383
    %v429 = vadd.f32 %v301, %v388
    %v430 = vadd.f32 %v302, %v388
    %v431 = vadd.f32 %v303, %v393
    %v432 = vadd.f32 %v304, %v393
    %v433 = vadd.f32 %v305, %v398
    %v434 = vadd.f32 %v306, %v398
    %v435 = vadd.f32 %v307, %v403
    %v436 = vadd.f32 %v308, %v403
    %v437 = vmax.f32 %v405, 0.0
    %v438 = vmax.f32 %v406, 0.0
    %v439 = vmax.f32 %v407, 0.0
    %v440 = vmax.f32 %v408, 0.0
    %v441 = vmax.f32 %v409, 0.0
    %v442 = vmax.f32 %v410, 0.0
    %v443 = vmax.f32 %v411, 0.0
    %v444 = vmax.f32 %v412, 0.0
    %v445 = vmax.f32 %v413, 0.0
    %v446 = vmax.f32 %v414, 0.0
    %v447 = vmax.f32 %v415, 0.0
    %v448 = vmax.f32 %v416, 0.0
    %v449 = vmax.f32 %v417, 0.0
    %v450 = vmax.f32 %v418, 0.0
    %v451 = vmax.f32 %v419, 0.0
    %v452 = vmax.f32 %v420, 0.0
    %v453 = vmax.f32 %v421, 0.0
    %v454 = vmax.f32 %v422, 0.0
    %v455 = vmax.f32 %v423, 0.0
    %v456 = vmax.f32 %v424, 0.0
    %v457 = vmax.f32 %v425, 0.0
    %v458 = vmax.f32 %v426, 0.0
    %v459 = vmax.f32 %v427, 0.0
    %v460 = vmax.f32 %v428, 0.0
    %v461 = vmax.f32 %v429, 0.0
    %v462 = vmax.f32 %v430, 0.0
    %v463 = vmax.f32 %v431, 0.0
    %v464 = vmax.f32 %v432, 0.0
    %v465 = vmax.f32 %v433, 0.0
    %v466 = vmax.f32 %v434, 0.0
    %v467 = vmax.f32 %v435, 0.0
    %v468 = vmax.f32 %v436, 0.0
    %v469 = vld [vmem:[%s3] sm:$0xf]
    %v470 = vld [vmem:[%s3 + $0x4] sm:$0xf]
    %v471 = vld [vmem:[%s3 + $0x8] sm:$0xf]
    %v472 = vld [vmem:[%s3 + $0xc] sm:$0xf]
    %v473 = vld [vmem:[%s3 + $0x10] sm:$0xf]
    %v474 = vld [vmem:[%s3 + $0x14] sm:$0xf]
    %v475 = vld [vmem:[%s3 + $0x18] sm:$0xf]
    %v476 = vld [vmem:[%s3 + $0x1c] sm:$0xf]
    %v477 = vld [vmem:[%s3 + $0x20] sm:$0xf]
    %v478 = vld [vmem:[%s3 + $0x24] sm:$0xf]
    %v479 = vld [vmem:[%s3 + $0x28] sm:$0xf]
    %v480 = vld [vmem:[%s3 + $0x2c] sm:$0xf]
    %v481 = vld [vmem:[%s3 + $0x30] sm:$0xf]
    %v482 = vld [vmem:[%s3 + $0x34] sm:$0xf]
    %v483 = vld [vmem:[%s3 + $0x38] sm:$0xf]
    %v484 = vld [vmem:[%s3 + $0x3c] sm:$0xf]
    %v485 = vpack.c.bf16 %v439, %v437
    %v486 = vpack.c.bf16 %v440, %v438
    %v487 = vpack.c.bf16 %v443, %v441
    %v488 = vpack.c.bf16 %v444, %v442
    %v489 = vpack.c.bf16 %v447, %v445
    %v490 = vpack.c.bf16 %v448, %v446
    %v491 = vpack.c.bf16 %v451, %v449
    %v492 = vpack.c.bf16 %v452, %v450
    %v493 = vpack.c.bf16 %v455, %v453
    %v494 = vpack.c.bf16 %v456, %v454
    %v495 = vpack.c.bf16 %v459, %v457
    %v496 = vpack.c.bf16 %v460, %v458
    %v497 = vpack.c.bf16 %v463, %v461
    %v498 = vpack.c.bf16 %v464, %v462
    %v499 = vpack.c.bf16 %v467, %v465
    %v500 = vpack.c.bf16 %v468, %v466
    %v501 = vld [vmem:[%s4] sm:$0xff]
    %v502 = vld [vmem:[%s4 + $0x8] sm:$0xff]
    %v503 = vld [vmem:[%s4 + $0x10] sm:$0xff]
    %v504 = vld [vmem:[%s4 + $0x18] sm:$0xff]
    %v505 = vld [vmem:[%s4 + $0x20] sm:$0xff]
    %v506 = vld [vmem:[%s4 + $0x28] sm:$0xff]
    %v507 = vld [vmem:[%s4 + $0x30] sm:$0xff]
    %v508 = vld [vmem:[%s4 + $0x38] sm:$0xff]
    %v509 = vld [vmem:[%s4 + $0x40] sm:$0xff]
    %v510 = vld [vmem:[%s4 + $0x48] sm:$0xff]
    %v511 = vld [vmem:[%s4 + $0x50] sm:$0xff]
    %v512 = vld [vmem:[%s4 + $0x58] sm:$0xff]
    %v513 = vld [vmem:[%s4 + $0x60] sm:$0xff]
    %v514 = vld [vmem:[%s4 + $0x68] sm:$0xff]
    %v515 = vld [vmem:[%s4 + $0x70] sm:$0xff]
    %v516 = vld [vmem:[%s4 + $0x78] sm:$0xff]
    %518 = vset.pattern.permute.xlu0 0
    %519 = vperm.xlu0 %518, %v501
    %v520 = vpop.permute.xlu0 %519
    %523 = vset.pattern.permute.xlu0 0
    %524 = vperm.xlu0 %523, %v502
    %v525 = vpop.permute.xlu0 %524
    %528 = vset.pattern.permute.xlu0 0
    %529 = vperm.xlu0 %528, %v503
    %v530 = vpop.permute.xlu0 %529
    %533 = vset.pattern.permute.xlu0 0
    %534 = vperm.xlu0 %533, %v504
    %v535 = vpop.permute.xlu0 %534
    %538 = vset.pattern.permute.xlu0 0
    %539 = vperm.xlu0 %538, %v505
    %v540 = vpop.permute.xlu0 %539
    %543 = vset.pattern.permute.xlu0 0
    %544 = vperm.xlu0 %543, %v506
    %v545 = vpop.permute.xlu0 %544
    %548 = vset.pattern.permute.xlu0 0
    %549 = vperm.xlu0 %548, %v507
    %v550 = vpop.permute.xlu0 %549
    %553 = vset.pattern.permute.xlu0 0
    %554 = vperm.xlu0 %553, %v508
    %v555 = vpop.permute.xlu0 %554
    %558 = vset.pattern.permute.xlu0 0
    %559 = vperm.xlu0 %558, %v509
    %v560 = vpop.permute.xlu0 %559
    %563 = vset.pattern.permute.xlu0 0
    %564 = vperm.xlu0 %563, %v510
    %v565 = vpop.permute.xlu0 %564
    %568 = vset.pattern.permute.xlu0 0
    %569 = vperm.xlu0 %568, %v511
    %v570 = vpop.permute.xlu0 %569
    %573 = vset.pattern.permute.xlu0 0
    %574 = vperm.xlu0 %573, %v512
    %v575 = vpop.permute.xlu0 %574
    %578 = vset.pattern.permute.xlu0 0
    %579 = vperm.xlu0 %578, %v513
    %v580 = vpop.permute.xlu0 %579
    %583 = vset.pattern.permute.xlu0 0
    %584 = vperm.xlu0 %583, %v514
    %v585 = vpop.permute.xlu0 %584
    %588 = vset.pattern.permute.xlu0 0
    %589 = vperm.xlu0 %588, %v515
    %v590 = vpop.permute.xlu0 %589
    %593 = vset.pattern.permute.xlu0 0
    %594 = vperm.xlu0 %593, %v516
    %v595 = vpop.permute.xlu0 %594
    %v613 = vunpack.c.l.b16 %v469
    %v614 = vunpack.c.l.b16 %v470
    %v615 = vunpack.c.l.b16 %v471
    %v616 = vunpack.c.l.b16 %v472
    %v617 = vunpack.c.l.b16 %v473
    %v618 = vunpack.c.l.b16 %v474
    %v619 = vunpack.c.l.b16 %v475
    %v620 = vunpack.c.l.b16 %v476
    %v621 = vunpack.c.l.b16 %v477
    %v622 = vunpack.c.l.b16 %v478
    %v623 = vunpack.c.l.b16 %v479
    %v624 = vunpack.c.l.b16 %v480
    %v625 = vunpack.c.l.b16 %v481
    %v626 = vunpack.c.l.b16 %v482
    %v627 = vunpack.c.l.b16 %v483
    %v628 = vunpack.c.l.b16 %v484
    %v629 = vpack.c.b16 %v614, %v613
    %v630 = vpack.c.b16 %v616, %v615
    %v631 = vpack.c.b16 %v618, %v617
    %v632 = vpack.c.b16 %v620, %v619
    %v633 = vpack.c.b16 %v622, %v621
    %v634 = vpack.c.b16 %v624, %v623
    %v635 = vpack.c.b16 %v626, %v625
    %v636 = vpack.c.b16 %v628, %v627
    %645 = vmatpush.bf16.msra.mxu0 %v499
    %646 = vmatpush.bf16.msra.mxu0 %v497
    %647 = vmatpush.bf16.msra.mxu0 %v495
    %648 = vmatpush.bf16.msra.mxu0 %v493
    %649 = vmatpush.bf16.msra.mxu0 %v491
    %650 = vmatpush.bf16.msra.mxu0 %v489
    %651 = vmatpush.bf16.msra.mxu0 %v487
    %652 = vmatpush.bf16.msra.mxu0 %v485
    %653 = vmatmul.bf16.gmra.mxu0 %v629
    %v654 = vpop.f32.mrf.mxu0
    %v655 = vadd.f32 %v520, %v654
    %v656 = vpop.f32.mrf.mxu0
    %v657 = vadd.f32 %v525, %v656
    %658 = vmatmul.bf16.gmra.mxu0 %v630
    %v659 = vpop.f32.mrf.mxu0
    %v660 = vadd.f32 %v530, %v659
    %v661 = vpop.f32.mrf.mxu0
    %v662 = vadd.f32 %v535, %v661
    %663 = vmatmul.bf16.gmra.mxu0 %v631
    %v664 = vpop.f32.mrf.mxu0
    %v665 = vadd.f32 %v540, %v664
    %v666 = vpop.f32.mrf.mxu0
    %v667 = vadd.f32 %v545, %v666
    %668 = vmatmul.bf16.gmra.mxu0 %v632
    %v669 = vpop.f32.mrf.mxu0
    %v670 = vadd.f32 %v550, %v669
    %v671 = vpop.f32.mrf.mxu0
    %v672 = vadd.f32 %v555, %v671
    %673 = vmatmul.bf16.gmra.mxu0 %v633
    %v674 = vpop.f32.mrf.mxu0
    %v675 = vadd.f32 %v560, %v674
    %v676 = vpop.f32.mrf.mxu0
    %v677 = vadd.f32 %v565, %v676
    %678 = vmatmul.bf16.gmra.mxu0 %v634
    %v679 = vpop.f32.mrf.mxu0
    %v680 = vadd.f32 %v570, %v679
    %v681 = vpop.f32.mrf.mxu0
    %v682 = vadd.f32 %v575, %v681
    %683 = vmatmul.bf16.gmra.mxu0 %v635
    %v684 = vpop.f32.mrf.mxu0
    %v685 = vadd.f32 %v580, %v684
    %v686 = vpop.f32.mrf.mxu0
    %v687 = vadd.f32 %v585, %v686
    %688 = vmatmul.bf16.gmra.mxu0 %v636
    %v689 = vpop.f32.mrf.mxu0
    %v690 = vadd.f32 %v590, %v689
    %v691 = vpop.f32.mrf.mxu0
    %v692 = vadd.f32 %v595, %v691
    %693 = vdwg.mxu0
    %694 = vmatpush.bf16.msra.mxu0 %v500
    %695 = vmatpush.bf16.msra.mxu0 %v498
    %696 = vmatpush.bf16.msra.mxu0 %v496
    %697 = vmatpush.bf16.msra.mxu0 %v494
    %698 = vmatpush.bf16.msra.mxu0 %v492
    %699 = vmatpush.bf16.msra.mxu0 %v490
    %700 = vmatpush.bf16.msra.mxu0 %v488
    %701 = vmatpush.bf16.msra.mxu0 %v486
    %702 = vmatmul.bf16.gmra.mxu0 %v629
    %v703 = vpop.f32.mrf.mxu0
    %v704 = vadd.f32 %v520, %v703
    %v705 = vpop.f32.mrf.mxu0
    %v706 = vadd.f32 %v525, %v705
    %707 = vmatmul.bf16.gmra.mxu0 %v630
    %v708 = vpop.f32.mrf.mxu0
    %v709 = vadd.f32 %v530, %v708
    %v710 = vpop.f32.mrf.mxu0
    %v711 = vadd.f32 %v535, %v710
    %712 = vmatmul.bf16.gmra.mxu0 %v631
    %v713 = vpop.f32.mrf.mxu0
    %v714 = vadd.f32 %v540, %v713
    %v715 = vpop.f32.mrf.mxu0
    %v716 = vadd.f32 %v545, %v715
    %717 = vmatmul.bf16.gmra.mxu0 %v632
    %v718 = vpop.f32.mrf.mxu0
    %v719 = vadd.f32 %v550, %v718
    %v720 = vpop.f32.mrf.mxu0
    %v721 = vadd.f32 %v555, %v720
    %722 = vmatmul.bf16.gmra.mxu0 %v633
    %v723 = vpop.f32.mrf.mxu0
    %v724 = vadd.f32 %v560, %v723
    %v725 = vpop.f32.mrf.mxu0
    %v726 = vadd.f32 %v565, %v725
    %727 = vmatmul.bf16.gmra.mxu0 %v634
    %v728 = vpop.f32.mrf.mxu0
    %v729 = vadd.f32 %v570, %v728
    %v730 = vpop.f32.mrf.mxu0
    %v731 = vadd.f32 %v575, %v730
    %732 = vmatmul.bf16.gmra.mxu0 %v635
    %v733 = vpop.f32.mrf.mxu0
    %v734 = vadd.f32 %v580, %v733
    %v735 = vpop.f32.mrf.mxu0
    %v736 = vadd.f32 %v585, %v735
    %737 = vmatmul.bf16.gmra.mxu0 %v636
    %v738 = vpop.f32.mrf.mxu0
    %v739 = vadd.f32 %v590, %v738
    %v740 = vpop.f32.mrf.mxu0
    %v741 = vadd.f32 %v595, %v740
    %742 = vdwg.mxu0
    %v743 = vmax.f32 %v655, 0.0
    %v744 = vmax.f32 %v704, 0.0
    %v745 = vmax.f32 %v657, 0.0
    %v746 = vmax.f32 %v706, 0.0
    %v747 = vmax.f32 %v660, 0.0
    %v748 = vmax.f32 %v709, 0.0
    %v749 = vmax.f32 %v662, 0.0
    %v750 = vmax.f32 %v711, 0.0
    %v751 = vmax.f32 %v665, 0.0
    %v752 = vmax.f32 %v714, 0.0
    %v753 = vmax.f32 %v667, 0.0
    %v754 = vmax.f32 %v716, 0.0
    %v755 = vmax.f32 %v670, 0.0
    %v756 = vmax.f32 %v719, 0.0
    %v757 = vmax.f32 %v672, 0.0
    %v758 = vmax.f32 %v721, 0.0
    %v759 = vmax.f32 %v675, 0.0
    %v760 = vmax.f32 %v724, 0.0
    %v761 = vmax.f32 %v677, 0.0
    %v762 = vmax.f32 %v726, 0.0
    %v763 = vmax.f32 %v680, 0.0
    %v764 = vmax.f32 %v729, 0.0
    %v765 = vmax.f32 %v682, 0.0
    %v766 = vmax.f32 %v731, 0.0
    %v767 = vmax.f32 %v685, 0.0
    %v768 = vmax.f32 %v734, 0.0
    %v769 = vmax.f32 %v687, 0.0
    %v770 = vmax.f32 %v736, 0.0
    %v771 = vmax.f32 %v690, 0.0
    %v772 = vmax.f32 %v739, 0.0
    %v773 = vmax.f32 %v692, 0.0
    %v774 = vmax.f32 %v741, 0.0
    %v775 = vld [vmem:[%s5] sm:$0xf]
    %v776 = vld [vmem:[%s5 + $0x4] sm:$0xf]
    %v777 = vld [vmem:[%s5 + $0x8] sm:$0xf]
    %v778 = vld [vmem:[%s5 + $0xc] sm:$0xf]
    %v779 = vld [vmem:[%s5 + $0x10] sm:$0xf]
    %v780 = vld [vmem:[%s5 + $0x14] sm:$0xf]
    %v781 = vld [vmem:[%s5 + $0x18] sm:$0xf]
    %v782 = vld [vmem:[%s5 + $0x1c] sm:$0xf]
    %v783 = vld [vmem:[%s5 + $0x20] sm:$0xf]
    %v784 = vld [vmem:[%s5 + $0x24] sm:$0xf]
    %v785 = vld [vmem:[%s5 + $0x28] sm:$0xf]
    %v786 = vld [vmem:[%s5 + $0x2c] sm:$0xf]
    %v787 = vld [vmem:[%s5 + $0x30] sm:$0xf]
    %v788 = vld [vmem:[%s5 + $0x34] sm:$0xf]
    %v789 = vld [vmem:[%s5 + $0x38] sm:$0xf]
    %v790 = vld [vmem:[%s5 + $0x3c] sm:$0xf]
    %v791 = vpack.c.bf16 %v745, %v743
    %v792 = vpack.c.bf16 %v746, %v744
    %v793 = vpack.c.bf16 %v749, %v747
    %v794 = vpack.c.bf16 %v750, %v748
    %v795 = vpack.c.bf16 %v753, %v751
    %v796 = vpack.c.bf16 %v754, %v752
    %v797 = vpack.c.bf16 %v757, %v755
    %v798 = vpack.c.bf16 %v758, %v756
    %v799 = vpack.c.bf16 %v761, %v759
    %v800 = vpack.c.bf16 %v762, %v760
    %v801 = vpack.c.bf16 %v765, %v763
    %v802 = vpack.c.bf16 %v766, %v764
    %v803 = vpack.c.bf16 %v769, %v767
    %v804 = vpack.c.bf16 %v770, %v768
    %v805 = vpack.c.bf16 %v773, %v771
    %v806 = vpack.c.bf16 %v774, %v772
    %v807 = vld [vmem:[%s6] sm:$0xff]
    %v808 = vld [vmem:[%s6 + $0x8] sm:$0xff]
    %v809 = vld [vmem:[%s6 + $0x10] sm:$0xff]
    %v810 = vld [vmem:[%s6 + $0x18] sm:$0xff]
    %v811 = vld [vmem:[%s6 + $0x20] sm:$0xff]
    %v812 = vld [vmem:[%s6 + $0x28] sm:$0xff]
    %v813 = vld [vmem:[%s6 + $0x30] sm:$0xff]
    %v814 = vld [vmem:[%s6 + $0x38] sm:$0xff]
    %v815 = vld [vmem:[%s6 + $0x40] sm:$0xff]
    %v816 = vld [vmem:[%s6 + $0x48] sm:$0xff]
    %v817 = vld [vmem:[%s6 + $0x50] sm:$0xff]
    %v818 = vld [vmem:[%s6 + $0x58] sm:$0xff]
    %v819 = vld [vmem:[%s6 + $0x60] sm:$0xff]
    %v820 = vld [vmem:[%s6 + $0x68] sm:$0xff]
    %v821 = vld [vmem:[%s6 + $0x70] sm:$0xff]
    %v822 = vld [vmem:[%s6 + $0x78] sm:$0xff]
    %824 = vset.pattern.permute.xlu0 0
    %825 = vperm.xlu0 %824, %v807
    %v826 = vpop.permute.xlu0 %825
    %829 = vset.pattern.permute.xlu0 0
    %830 = vperm.xlu0 %829, %v808
    %v831 = vpop.permute.xlu0 %830
    %834 = vset.pattern.permute.xlu0 0
    %835 = vperm.xlu0 %834, %v809
    %v836 = vpop.permute.xlu0 %835
    %839 = vset.pattern.permute.xlu0 0
    %840 = vperm.xlu0 %839, %v810
    %v841 = vpop.permute.xlu0 %840
    %844 = vset.pattern.permute.xlu0 0
    %845 = vperm.xlu0 %844, %v811
    %v846 = vpop.permute.xlu0 %845
    %849 = vset.pattern.permute.xlu0 0
    %850 = vperm.xlu0 %849, %v812
    %v851 = vpop.permute.xlu0 %850
    %854 = vset.pattern.permute.xlu0 0
    %855 = vperm.xlu0 %854, %v813
    %v856 = vpop.permute.xlu0 %855
    %859 = vset.pattern.permute.xlu0 0
    %860 = vperm.xlu0 %859, %v814
    %v861 = vpop.permute.xlu0 %860
    %864 = vset.pattern.permute.xlu0 0
    %865 = vperm.xlu0 %864, %v815
    %v866 = vpop.permute.xlu0 %865
    %869 = vset.pattern.permute.xlu0 0
    %870 = vperm.xlu0 %869, %v816
    %v871 = vpop.permute.xlu0 %870
    %874 = vset.pattern.permute.xlu0 0
    %875 = vperm.xlu0 %874, %v817
    %v876 = vpop.permute.xlu0 %875
    %879 = vset.pattern.permute.xlu0 0
    %880 = vperm.xlu0 %879, %v818
    %v881 = vpop.permute.xlu0 %880
    %884 = vset.pattern.permute.xlu0 0
    %885 = vperm.xlu0 %884, %v819
    %v886 = vpop.permute.xlu0 %885
    %889 = vset.pattern.permute.xlu0 0
    %890 = vperm.xlu0 %889, %v820
    %v891 = vpop.permute.xlu0 %890
    %894 = vset.pattern.permute.xlu0 0
    %895 = vperm.xlu0 %894, %v821
    %v896 = vpop.permute.xlu0 %895
    %899 = vset.pattern.permute.xlu0 0
    %900 = vperm.xlu0 %899, %v822
    %v901 = vpop.permute.xlu0 %900
    %v919 = vunpack.c.l.b16 %v775
    %v920 = vunpack.c.l.b16 %v776
    %v921 = vunpack.c.l.b16 %v777
    %v922 = vunpack.c.l.b16 %v778
    %v923 = vunpack.c.l.b16 %v779
    %v924 = vunpack.c.l.b16 %v780
    %v925 = vunpack.c.l.b16 %v781
    %v926 = vunpack.c.l.b16 %v782
    %v927 = vunpack.c.l.b16 %v783
    %v928 = vunpack.c.l.b16 %v784
    %v929 = vunpack.c.l.b16 %v785
    %v930 = vunpack.c.l.b16 %v786
    %v931 = vunpack.c.l.b16 %v787
    %v932 = vunpack.c.l.b16 %v788
    %v933 = vunpack.c.l.b16 %v789
    %v934 = vunpack.c.l.b16 %v790
    %v935 = vpack.c.b16 %v920, %v919
    %v936 = vpack.c.b16 %v922, %v921
    %v937 = vpack.c.b16 %v924, %v923
    %v938 = vpack.c.b16 %v926, %v925
    %v939 = vpack.c.b16 %v928, %v927
    %v940 = vpack.c.b16 %v930, %v929
    %v941 = vpack.c.b16 %v932, %v931
    %v942 = vpack.c.b16 %v934, %v933
    %951 = vmatpush.bf16.msra.mxu0 %v805
    %952 = vmatpush.bf16.msra.mxu0 %v803
    %953 = vmatpush.bf16.msra.mxu0 %v801
    %954 = vmatpush.bf16.msra.mxu0 %v799
    %955 = vmatpush.bf16.msra.mxu0 %v797
    %956 = vmatpush.bf16.msra.mxu0 %v795
    %957 = vmatpush.bf16.msra.mxu0 %v793
    %958 = vmatpush.bf16.msra.mxu0 %v791
    %959 = vmatmul.bf16.gmra.mxu0 %v935
    %v960 = vpop.f32.mrf.mxu0
    %v961 = vadd.f32 %v826, %v960
    %v962 = vpop.f32.mrf.mxu0
    %v963 = vadd.f32 %v831, %v962
    %964 = vmatmul.bf16.gmra.mxu0 %v936
    %v965 = vpop.f32.mrf.mxu0
    %v966 = vadd.f32 %v836, %v965
    %v967 = vpop.f32.mrf.mxu0
    %v968 = vadd.f32 %v841, %v967
    %969 = vmatmul.bf16.gmra.mxu0 %v937
    %v970 = vpop.f32.mrf.mxu0
    %v971 = vadd.f32 %v846, %v970
    %v972 = vpop.f32.mrf.mxu0
    %v973 = vadd.f32 %v851, %v972
    %974 = vmatmul.bf16.gmra.mxu0 %v938
    %v975 = vpop.f32.mrf.mxu0
    %v976 = vadd.f32 %v856, %v975
    %v977 = vpop.f32.mrf.mxu0
    %v978 = vadd.f32 %v861, %v977
    %979 = vmatmul.bf16.gmra.mxu0 %v939
    %v980 = vpop.f32.mrf.mxu0
    %v981 = vadd.f32 %v866, %v980
    %v982 = vpop.f32.mrf.mxu0
    %v983 = vadd.f32 %v871, %v982
    %984 = vmatmul.bf16.gmra.mxu0 %v940
    %v985 = vpop.f32.mrf.mxu0
    %v986 = vadd.f32 %v876, %v985
    %v987 = vpop.f32.mrf.mxu0
    %v988 = vadd.f32 %v881, %v987
    %989 = vmatmul.bf16.gmra.mxu0 %v941
    %v990 = vpop.f32.mrf.mxu0
    %v991 = vadd.f32 %v886, %v990
    %v992 = vpop.f32.mrf.mxu0
    %v993 = vadd.f32 %v891, %v992
    %994 = vmatmul.bf16.gmra.mxu0 %v942
    %v995 = vpop.f32.mrf.mxu0
    %v996 = vadd.f32 %v896, %v995
    %v997 = vpop.f32.mrf.mxu0
    %v998 = vadd.f32 %v901, %v997
    %999 = vdwg.mxu0
    %1000 = vmatpush.bf16.msra.mxu0 %v806
    %1001 = vmatpush.bf16.msra.mxu0 %v804
    %1002 = vmatpush.bf16.msra.mxu0 %v802
    %1003 = vmatpush.bf16.msra.mxu0 %v800
    %1004 = vmatpush.bf16.msra.mxu0 %v798
    %1005 = vmatpush.bf16.msra.mxu0 %v796
    %1006 = vmatpush.bf16.msra.mxu0 %v794
    %1007 = vmatpush.bf16.msra.mxu0 %v792
    %1008 = vmatmul.bf16.gmra.mxu0 %v935
    %v1009 = vpop.f32.mrf.mxu0
    %v1010 = vadd.f32 %v826, %v1009
    %v1011 = vpop.f32.mrf.mxu0
    %v1012 = vadd.f32 %v831, %v1011
    %1013 = vmatmul.bf16.gmra.mxu0 %v936
    %v1014 = vpop.f32.mrf.mxu0
    %v1015 = vadd.f32 %v836, %v1014
    %v1016 = vpop.f32.mrf.mxu0
    %v1017 = vadd.f32 %v841, %v1016
    %1018 = vmatmul.bf16.gmra.mxu0 %v937
    %v1019 = vpop.f32.mrf.mxu0
    %v1020 = vadd.f32 %v846, %v1019
    %v1021 = vpop.f32.mrf.mxu0
    %v1022 = vadd.f32 %v851, %v1021
    %1023 = vmatmul.bf16.gmra.mxu0 %v938
    %v1024 = vpop.f32.mrf.mxu0
    %v1025 = vadd.f32 %v856, %v1024
    %v1026 = vpop.f32.mrf.mxu0
    %v1027 = vadd.f32 %v861, %v1026
    %1028 = vmatmul.bf16.gmra.mxu0 %v939
    %v1029 = vpop.f32.mrf.mxu0
    %v1030 = vadd.f32 %v866, %v1029
    %v1031 = vpop.f32.mrf.mxu0
    %v1032 = vadd.f32 %v871, %v1031
    %1033 = vmatmul.bf16.gmra.mxu0 %v940
    %v1034 = vpop.f32.mrf.mxu0
    %v1035 = vadd.f32 %v876, %v1034
    %v1036 = vpop.f32.mrf.mxu0
    %v1037 = vadd.f32 %v881, %v1036
    %1038 = vmatmul.bf16.gmra.mxu0 %v941
    %v1039 = vpop.f32.mrf.mxu0
    %v1040 = vadd.f32 %v886, %v1039
    %v1041 = vpop.f32.mrf.mxu0
    %v1042 = vadd.f32 %v891, %v1041
    %1043 = vmatmul.bf16.gmra.mxu0 %v942
    %v1044 = vpop.f32.mrf.mxu0
    %v1045 = vadd.f32 %v896, %v1044
    %v1046 = vpop.f32.mrf.mxu0
    %v1047 = vadd.f32 %v901, %v1046
    %1048 = vdwg.mxu0
    %v1049 = vmax.f32 %v961, 0.0
    %v1050 = vmax.f32 %v1010, 0.0
    %v1051 = vmax.f32 %v963, 0.0
    %v1052 = vmax.f32 %v1012, 0.0
    %v1053 = vmax.f32 %v966, 0.0
    %v1054 = vmax.f32 %v1015, 0.0
    %v1055 = vmax.f32 %v968, 0.0
    %v1056 = vmax.f32 %v1017, 0.0
    %v1057 = vmax.f32 %v971, 0.0
    %v1058 = vmax.f32 %v1020, 0.0
    %v1059 = vmax.f32 %v973, 0.0
    %v1060 = vmax.f32 %v1022, 0.0
    %v1061 = vmax.f32 %v976, 0.0
    %v1062 = vmax.f32 %v1025, 0.0
    %v1063 = vmax.f32 %v978, 0.0
    %v1064 = vmax.f32 %v1027, 0.0
    %v1065 = vmax.f32 %v981, 0.0
    %v1066 = vmax.f32 %v1030, 0.0
    %v1067 = vmax.f32 %v983, 0.0
    %v1068 = vmax.f32 %v1032, 0.0
    %v1069 = vmax.f32 %v986, 0.0
    %v1070 = vmax.f32 %v1035, 0.0
    %v1071 = vmax.f32 %v988, 0.0
    %v1072 = vmax.f32 %v1037, 0.0
    %v1073 = vmax.f32 %v991, 0.0
    %v1074 = vmax.f32 %v1040, 0.0
    %v1075 = vmax.f32 %v993, 0.0
    %v1076 = vmax.f32 %v1042, 0.0
    %v1077 = vmax.f32 %v996, 0.0
    %v1078 = vmax.f32 %v1045, 0.0
    %v1079 = vmax.f32 %v998, 0.0
    %v1080 = vmax.f32 %v1047, 0.0
    %v1081 = vld [vmem:[%s7] sm:$0xf]
    %v1082 = vld [vmem:[%s7 + $0x4] sm:$0xf]
    %v1083 = vld [vmem:[%s7 + $0x8] sm:$0xf]
    %v1084 = vld [vmem:[%s7 + $0xc] sm:$0xf]
    %v1085 = vld [vmem:[%s7 + $0x10] sm:$0xf]
    %v1086 = vld [vmem:[%s7 + $0x14] sm:$0xf]
    %v1087 = vld [vmem:[%s7 + $0x18] sm:$0xf]
    %v1088 = vld [vmem:[%s7 + $0x1c] sm:$0xf]
    %v1089 = vld [vmem:[%s7 + $0x20] sm:$0xf]
    %v1090 = vld [vmem:[%s7 + $0x24] sm:$0xf]
    %v1091 = vld [vmem:[%s7 + $0x28] sm:$0xf]
    %v1092 = vld [vmem:[%s7 + $0x2c] sm:$0xf]
    %v1093 = vld [vmem:[%s7 + $0x30] sm:$0xf]
    %v1094 = vld [vmem:[%s7 + $0x34] sm:$0xf]
    %v1095 = vld [vmem:[%s7 + $0x38] sm:$0xf]
    %v1096 = vld [vmem:[%s7 + $0x3c] sm:$0xf]
    %v1097 = vpack.c.bf16 %v1051, %v1049
    %v1098 = vpack.c.bf16 %v1052, %v1050
    %v1099 = vpack.c.bf16 %v1055, %v1053
    %v1100 = vpack.c.bf16 %v1056, %v1054
    %v1101 = vpack.c.bf16 %v1059, %v1057
    %v1102 = vpack.c.bf16 %v1060, %v1058
    %v1103 = vpack.c.bf16 %v1063, %v1061
    %v1104 = vpack.c.bf16 %v1064, %v1062
    %v1105 = vpack.c.bf16 %v1067, %v1065
    %v1106 = vpack.c.bf16 %v1068, %v1066
    %v1107 = vpack.c.bf16 %v1071, %v1069
    %v1108 = vpack.c.bf16 %v1072, %v1070
    %v1109 = vpack.c.bf16 %v1075, %v1073
    %v1110 = vpack.c.bf16 %v1076, %v1074
    %v1111 = vpack.c.bf16 %v1079, %v1077
    %v1112 = vpack.c.bf16 %v1080, %v1078
    %v1113 = vld [vmem:[%s8] sm:$0xff]
    %v1114 = vld [vmem:[%s8 + $0x8] sm:$0xff]
    %v1115 = vld [vmem:[%s8 + $0x10] sm:$0xff]
    %v1116 = vld [vmem:[%s8 + $0x18] sm:$0xff]
    %v1117 = vld [vmem:[%s8 + $0x20] sm:$0xff]
    %v1118 = vld [vmem:[%s8 + $0x28] sm:$0xff]
    %v1119 = vld [vmem:[%s8 + $0x30] sm:$0xff]
    %v1120 = vld [vmem:[%s8 + $0x38] sm:$0xff]
    %v1121 = vld [vmem:[%s8 + $0x40] sm:$0xff]
    %v1122 = vld [vmem:[%s8 + $0x48] sm:$0xff]
    %v1123 = vld [vmem:[%s8 + $0x50] sm:$0xff]
    %v1124 = vld [vmem:[%s8 + $0x58] sm:$0xff]
    %v1125 = vld [vmem:[%s8 + $0x60] sm:$0xff]
    %v1126 = vld [vmem:[%s8 + $0x68] sm:$0xff]
    %v1127 = vld [vmem:[%s8 + $0x70] sm:$0xff]
    %v1128 = vld [vmem:[%s8 + $0x78] sm:$0xff]
    %1130 = vset.pattern.permute.xlu0 0
    %1131 = vperm.xlu0 %1130, %v1113
    %v1132 = vpop.permute.xlu0 %1131
    %1135 = vset.pattern.permute.xlu0 0
    %1136 = vperm.xlu0 %1135, %v1114
    %v1137 = vpop.permute.xlu0 %1136
    %1140 = vset.pattern.permute.xlu0 0
    %1141 = vperm.xlu0 %1140, %v1115
    %v1142 = vpop.permute.xlu0 %1141
    %1145 = vset.pattern.permute.xlu0 0
    %1146 = vperm.xlu0 %1145, %v1116
    %v1147 = vpop.permute.xlu0 %1146
    %1150 = vset.pattern.permute.xlu0 0
    %1151 = vperm.xlu0 %1150, %v1117
    %v1152 = vpop.permute.xlu0 %1151
    %1155 = vset.pattern.permute.xlu0 0
    %1156 = vperm.xlu0 %1155, %v1118
    %v1157 = vpop.permute.xlu0 %1156
    %1160 = vset.pattern.permute.xlu0 0
    %1161 = vperm.xlu0 %1160, %v1119
    %v1162 = vpop.permute.xlu0 %1161
    %1165 = vset.pattern.permute.xlu0 0
    %1166 = vperm.xlu0 %1165, %v1120
    %v1167 = vpop.permute.xlu0 %1166
    %1170 = vset.pattern.permute.xlu0 0
    %1171 = vperm.xlu0 %1170, %v1121
    %v1172 = vpop.permute.xlu0 %1171
    %1175 = vset.pattern.permute.xlu0 0
    %1176 = vperm.xlu0 %1175, %v1122
    %v1177 = vpop.permute.xlu0 %1176
    %1180 = vset.pattern.permute.xlu0 0
    %1181 = vperm.xlu0 %1180, %v1123
    %v1182 = vpop.permute.xlu0 %1181
    %1185 = vset.pattern.permute.xlu0 0
    %1186 = vperm.xlu0 %1185, %v1124
    %v1187 = vpop.permute.xlu0 %1186
    %1190 = vset.pattern.permute.xlu0 0
    %1191 = vperm.xlu0 %1190, %v1125
    %v1192 = vpop.permute.xlu0 %1191
    %1195 = vset.pattern.permute.xlu0 0
    %1196 = vperm.xlu0 %1195, %v1126
    %v1197 = vpop.permute.xlu0 %1196
    %1200 = vset.pattern.permute.xlu0 0
    %1201 = vperm.xlu0 %1200, %v1127
    %v1202 = vpop.permute.xlu0 %1201
    %1205 = vset.pattern.permute.xlu0 0
    %1206 = vperm.xlu0 %1205, %v1128
    %v1207 = vpop.permute.xlu0 %1206
    %v1225 = vunpack.c.l.b16 %v1081
    %v1226 = vunpack.c.l.b16 %v1082
    %v1227 = vunpack.c.l.b16 %v1083
    %v1228 = vunpack.c.l.b16 %v1084
    %v1229 = vunpack.c.l.b16 %v1085
    %v1230 = vunpack.c.l.b16 %v1086
    %v1231 = vunpack.c.l.b16 %v1087
    %v1232 = vunpack.c.l.b16 %v1088
    %v1233 = vunpack.c.l.b16 %v1089
    %v1234 = vunpack.c.l.b16 %v1090
    %v1235 = vunpack.c.l.b16 %v1091
    %v1236 = vunpack.c.l.b16 %v1092
    %v1237 = vunpack.c.l.b16 %v1093
    %v1238 = vunpack.c.l.b16 %v1094
    %v1239 = vunpack.c.l.b16 %v1095
    %v1240 = vunpack.c.l.b16 %v1096
    %v1241 = vpack.c.b16 %v1226, %v1225
    %v1242 = vpack.c.b16 %v1228, %v1227
    %v1243 = vpack.c.b16 %v1230, %v1229
    %v1244 = vpack.c.b16 %v1232, %v1231
    %v1245 = vpack.c.b16 %v1234, %v1233
    %v1246 = vpack.c.b16 %v1236, %v1235
    %v1247 = vpack.c.b16 %v1238, %v1237
    %v1248 = vpack.c.b16 %v1240, %v1239
    %1257 = vmatpush.bf16.msra.mxu0 %v1111
    %1258 = vmatpush.bf16.msra.mxu0 %v1109
    %1259 = vmatpush.bf16.msra.mxu0 %v1107
    %1260 = vmatpush.bf16.msra.mxu0 %v1105
    %1261 = vmatpush.bf16.msra.mxu0 %v1103
    %1262 = vmatpush.bf16.msra.mxu0 %v1101
    %1263 = vmatpush.bf16.msra.mxu0 %v1099
    %1264 = vmatpush.bf16.msra.mxu0 %v1097
    %1265 = vmatmul.bf16.gmra.mxu0 %v1241
    %v1266 = vpop.f32.mrf.mxu0
    %v1267 = vadd.f32 %v1132, %v1266
    %v1268 = vpop.f32.mrf.mxu0
    %v1269 = vadd.f32 %v1137, %v1268
    %1270 = vmatmul.bf16.gmra.mxu0 %v1242
    %v1271 = vpop.f32.mrf.mxu0
    %v1272 = vadd.f32 %v1142, %v1271
    %v1273 = vpop.f32.mrf.mxu0
    %v1274 = vadd.f32 %v1147, %v1273
    %1275 = vmatmul.bf16.gmra.mxu0 %v1243
    %v1276 = vpop.f32.mrf.mxu0
    %v1277 = vadd.f32 %v1152, %v1276
    %v1278 = vpop.f32.mrf.mxu0
    %v1279 = vadd.f32 %v1157, %v1278
    %1280 = vmatmul.bf16.gmra.mxu0 %v1244
    %v1281 = vpop.f32.mrf.mxu0
    %v1282 = vadd.f32 %v1162, %v1281
    %v1283 = vpop.f32.mrf.mxu0
    %v1284 = vadd.f32 %v1167, %v1283
    %1285 = vmatmul.bf16.gmra.mxu0 %v1245
    %v1286 = vpop.f32.mrf.mxu0
    %v1287 = vadd.f32 %v1172, %v1286
    %v1288 = vpop.f32.mrf.mxu0
    %v1289 = vadd.f32 %v1177, %v1288
    %1290 = vmatmul.bf16.gmra.mxu0 %v1246
    %v1291 = vpop.f32.mrf.mxu0
    %v1292 = vadd.f32 %v1182, %v1291
    %v1293 = vpop.f32.mrf.mxu0
    %v1294 = vadd.f32 %v1187, %v1293
    %1295 = vmatmul.bf16.gmra.mxu0 %v1247
    %v1296 = vpop.f32.mrf.mxu0
    %v1297 = vadd.f32 %v1192, %v1296
    %v1298 = vpop.f32.mrf.mxu0
    %v1299 = vadd.f32 %v1197, %v1298
    %1300 = vmatmul.bf16.gmra.mxu0 %v1248
    %v1301 = vpop.f32.mrf.mxu0
    %v1302 = vadd.f32 %v1202, %v1301
    %v1303 = vpop.f32.mrf.mxu0
    %v1304 = vadd.f32 %v1207, %v1303
    %1305 = vdwg.mxu0
    %1306 = vmatpush.bf16.msra.mxu0 %v1112
    %1307 = vmatpush.bf16.msra.mxu0 %v1110
    %1308 = vmatpush.bf16.msra.mxu0 %v1108
    %1309 = vmatpush.bf16.msra.mxu0 %v1106
    %1310 = vmatpush.bf16.msra.mxu0 %v1104
    %1311 = vmatpush.bf16.msra.mxu0 %v1102
    %1312 = vmatpush.bf16.msra.mxu0 %v1100
    %1313 = vmatpush.bf16.msra.mxu0 %v1098
    %1314 = vmatmul.bf16.gmra.mxu0 %v1241
    %v1315 = vpop.f32.mrf.mxu0
    %v1316 = vadd.f32 %v1132, %v1315
    %v1317 = vpop.f32.mrf.mxu0
    %v1318 = vadd.f32 %v1137, %v1317
    %1319 = vmatmul.bf16.gmra.mxu0 %v1242
    %v1320 = vpop.f32.mrf.mxu0
    %v1321 = vadd.f32 %v1142, %v1320
    %v1322 = vpop.f32.mrf.mxu0
    %v1323 = vadd.f32 %v1147, %v1322
    %1324 = vmatmul.bf16.gmra.mxu0 %v1243
    %v1325 = vpop.f32.mrf.mxu0
    %v1326 = vadd.f32 %v1152, %v1325
    %v1327 = vpop.f32.mrf.mxu0
    %v1328 = vadd.f32 %v1157, %v1327
    %1329 = vmatmul.bf16.gmra.mxu0 %v1244
    %v1330 = vpop.f32.mrf.mxu0
    %v1331 = vadd.f32 %v1162, %v1330
    %v1332 = vpop.f32.mrf.mxu0
    %v1333 = vadd.f32 %v1167, %v1332
    %1334 = vmatmul.bf16.gmra.mxu0 %v1245
    %v1335 = vpop.f32.mrf.mxu0
    %v1336 = vadd.f32 %v1172, %v1335
    %v1337 = vpop.f32.mrf.mxu0
    %v1338 = vadd.f32 %v1177, %v1337
    %1339 = vmatmul.bf16.gmra.mxu0 %v1246
    %v1340 = vpop.f32.mrf.mxu0
    %v1341 = vadd.f32 %v1182, %v1340
    %v1342 = vpop.f32.mrf.mxu0
    %v1343 = vadd.f32 %v1187, %v1342
    %1344 = vmatmul.bf16.gmra.mxu0 %v1247
    %v1345 = vpop.f32.mrf.mxu0
    %v1346 = vadd.f32 %v1192, %v1345
    %v1347 = vpop.f32.mrf.mxu0
    %v1348 = vadd.f32 %v1197, %v1347
    %1349 = vmatmul.bf16.gmra.mxu0 %v1248
    %v1350 = vpop.f32.mrf.mxu0
    %v1351 = vadd.f32 %v1202, %v1350
    %v1352 = vpop.f32.mrf.mxu0
    %v1353 = vadd.f32 %v1207, %v1352
    %1354 = vdwg.mxu0
    %v1355 = vmax.f32 %v1267, 0.0
    %v1356 = vmax.f32 %v1316, 0.0
    %v1357 = vmax.f32 %v1269, 0.0
    %v1358 = vmax.f32 %v1318, 0.0
    %v1359 = vmax.f32 %v1272, 0.0
    %v1360 = vmax.f32 %v1321, 0.0
    %v1361 = vmax.f32 %v1274, 0.0
    %v1362 = vmax.f32 %v1323, 0.0
    %v1363 = vmax.f32 %v1277, 0.0
    %v1364 = vmax.f32 %v1326, 0.0
    %v1365 = vmax.f32 %v1279, 0.0
    %v1366 = vmax.f32 %v1328, 0.0
    %v1367 = vmax.f32 %v1282, 0.0
    %v1368 = vmax.f32 %v1331, 0.0
    %v1369 = vmax.f32 %v1284, 0.0
    %v1370 = vmax.f32 %v1333, 0.0
    %v1371 = vmax.f32 %v1287, 0.0
    %v1372 = vmax.f32 %v1336, 0.0
    %v1373 = vmax.f32 %v1289, 0.0
    %v1374 = vmax.f32 %v1338, 0.0
    %v1375 = vmax.f32 %v1292, 0.0
    %v1376 = vmax.f32 %v1341, 0.0
    %v1377 = vmax.f32 %v1294, 0.0
    %v1378 = vmax.f32 %v1343, 0.0
    %v1379 = vmax.f32 %v1297, 0.0
    %v1380 = vmax.f32 %v1346, 0.0
    %v1381 = vmax.f32 %v1299, 0.0
    %v1382 = vmax.f32 %v1348, 0.0
    %v1383 = vmax.f32 %v1302, 0.0
    %v1384 = vmax.f32 %v1351, 0.0
    %v1385 = vmax.f32 %v1304, 0.0
    %v1386 = vmax.f32 %v1353, 0.0
    %v1387 = vld [vmem:[%s9] sm:$0xf]
    %v1388 = vld [vmem:[%s9 + $0x4] sm:$0xf]
    %v1389 = vpack.c.bf16 %v1357, %v1355
    %v1390 = vpack.c.bf16 %v1358, %v1356
    %v1391 = vpack.c.bf16 %v1361, %v1359
    %v1392 = vpack.c.bf16 %v1362, %v1360
    %v1393 = vpack.c.bf16 %v1365, %v1363
    %v1394 = vpack.c.bf16 %v1366, %v1364
    %v1395 = vpack.c.bf16 %v1369, %v1367
    %v1396 = vpack.c.bf16 %v1370, %v1368
    %v1397 = vpack.c.bf16 %v1373, %v1371
    %v1398 = vpack.c.bf16 %v1374, %v1372
    %v1399 = vpack.c.bf16 %v1377, %v1375
    %v1400 = vpack.c.bf16 %v1378, %v1376
    %v1401 = vpack.c.bf16 %v1381, %v1379
    %v1402 = vpack.c.bf16 %v1382, %v1380
    %v1403 = vpack.c.bf16 %v1385, %v1383
    %v1404 = vpack.c.bf16 %v1386, %v1384
    %v1405 = vld [vmem:[%s10] sm:$0xff]
    %v1406 = vld [vmem:[%s10 + $0x8] sm:$0xff]
    %1408 = vset.pattern.permute.xlu0 0
    %1409 = vperm.xlu0 %1408, %v1405
    %v1410 = vpop.permute.xlu0 %1409
    %1413 = vset.pattern.permute.xlu0 0
    %1414 = vperm.xlu0 %1413, %v1406
    %v1415 = vpop.permute.xlu0 %1414
    %v1419 = vunpack.c.l.b16 %v1387
    %v1420 = vunpack.c.l.b16 %v1388
    %v1421 = vpack.c.b16 %v1420, %v1419
    %1423 = vmatpush.bf16.msra.mxu0 %v1403
    %1424 = vmatpush.bf16.msra.mxu0 %v1401
    %1425 = vmatpush.bf16.msra.mxu0 %v1399
    %1426 = vmatpush.bf16.msra.mxu0 %v1397
    %1427 = vmatpush.bf16.msra.mxu0 %v1395
    %1428 = vmatpush.bf16.msra.mxu0 %v1393
    %1429 = vmatpush.bf16.msra.mxu0 %v1391
    %1430 = vmatpush.bf16.msra.mxu0 %v1389
    %1431 = vmatmul.bf16.gmra.mxu0 %v1421
    %v1432 = vpop.f32.mrf.mxu0
    %v1433 = vadd.f32 %v1410, %v1432
    %v1434 = vpop.f32.mrf.mxu0
    %v1435 = vadd.f32 %v1415, %v1434
    %1436 = vdwg.mxu0
    %1437 = vmatpush.bf16.msra.mxu0 %v1404
    %1438 = vmatpush.bf16.msra.mxu0 %v1402
    %1439 = vmatpush.bf16.msra.mxu0 %v1400
    %1440 = vmatpush.bf16.msra.mxu0 %v1398
    %1441 = vmatpush.bf16.msra.mxu0 %v1396
    %1442 = vmatpush.bf16.msra.mxu0 %v1394
    %1443 = vmatpush.bf16.msra.mxu0 %v1392
    %1444 = vmatpush.bf16.msra.mxu0 %v1390
    %1445 = vmatmul.bf16.gmra.mxu0 %v1421
    %v1446 = vpop.f32.mrf.mxu0
    %v1447 = vadd.f32 %v1410, %v1446
    %v1448 = vpop.f32.mrf.mxu0
    %v1449 = vadd.f32 %v1415, %v1448
    %1450 = vdwg.mxu0
    %1451 = vst [vmem:[#allocation2] sm:$0xff] %v1433
    %1452 = vst [vmem:[#allocation2 + $0x8] sm:$0xff] %v1447
    %1453 = vst [vmem:[#allocation2 + $0x10] sm:$0xff] %v1435
    %1454 = vst [vmem:[#allocation2 + $0x18] sm:$0xff] %v1449
    // Predicated region
    $region46: #{_forward_padded.1} parent=1 // pred_check
      _
    $region47: #{_forward_padded.1} parent=1 // pred_check_branch
      %1456 = sbr.rel (0) target = $region49
    $region48: #{_forward_padded.1} parent=1 // pred_region
      %1458 = vsyncadd [#allocation3], 0
      %s1459 = sshll.u32 [#allocation2], 4
      %s1460 = int_to_ptr.vmem [resolvable:$true] %s1459
      %s1461 = sshll.u32 %s11, 4
      %s1462 = int_to_ptr.hbm [resolvable:$true] %s1461
      %1467 = dma.vmem_to_hbm [thread:$0]  %s1460, 512, %s1462, [#allocation3], 256, 256, 16
    $region49: #{_forward_padded.1} parent=1 // pred_fallthru
      _
    // Predicated region
    $region50: #{_forward_padded.1} parent=1 // pred_check
      _
    $region51: #{_forward_padded.1} parent=1 // pred_check_branch
      %1469 = sbr.rel (0) target = $region53
    $region52: #{_forward_padded.1} parent=1 // pred_region
      %1471 = dma.done [#allocation3], 512
    $region53: #{_forward_padded.1} parent=1 // pred_fallthru
      _
    %1472 = vsyncpa [#allocation3], 1

</llo_original>
